<compile_context>
chip_gen: v6e
topology: v6e:2x2x1
jax: 0.10.0
libtpu: 0.0.40
codegen_flags: <defaults>
</compile_context>

<pallas_src>
import functools

import jax
import jax.numpy as jnp
from jax.experimental import pallas as pl
from jax.experimental.pallas import tpu as pltpu


def _se_kernel_chw(inv_hw, x_ref, w_ref, b_ref, o_ref):
    # x_ref/o_ref: (NB, C, HW) VMEM; w_ref: (1, C) VMEM; b_ref: (1,) SMEM.
    # Reduction pass (f32 accumulation): per-sample gate scalar.
    ch_sum = jnp.sum(x_ref[...].astype(jnp.float32), axis=2)               # (NB, C)
    s = jnp.sum(ch_sum * w_ref[...], axis=1, keepdims=True) * inv_hw + b_ref[0]
    scale = jax.nn.sigmoid(s)                                              # (NB, 1)
    # Gating pass: second (cheap) VMEM read; multiply in the native dtype.
    o_ref[...] = x_ref[...] * scale[:, :, None].astype(o_ref.dtype)


def _se_kernel_flat(inv_hw, x_ref, w_ref, b_ref, o_ref):
    # Lane-dense layout for HW not a multiple of 128.
    # x_ref/o_ref: (NB, 1, C*HW) VMEM; w_ref: (1, 1, C*HW) broadcast weight;
    # b_ref: (1,) SMEM.
    xf = x_ref[...].astype(jnp.float32)                                    # (NB,1,CHW)
    s = jnp.sum(xf * w_ref[...], axis=(1, 2), keepdims=True) * inv_hw + b_ref[0]
    scale = jax.nn.sigmoid(s)                                              # (NB,1,1)
    o_ref[...] = x_ref[...] * scale.astype(o_ref.dtype)


def _tpu_generation():
    try:
        kind = jax.devices()[0].device_kind.lower()
    except Exception:  # pragma: no cover - CPU/interpret fallback
        kind = ""
    if "v7" in kind:
        return 7
    if "v6" in kind:
        return 6
    if "v5" in kind:
        return 5
    return 0


def _pick_tiling(n, bytes_per_sample):
    """Samples per grid step + step count, sized per TPU generation."""
    gen = _tpu_generation()
    num_cores = 2 if gen == 7 else 1          # v7x: 2 TensorCores share the grid
    if gen >= 6:
        target = 6 << 20                      # ~6 MiB blocks on v6e / v7x
        budget = 24 << 20                     # 4x block (in+out, double-buffered)
    else:
        target = 2 << 20                      # v5e (and unknown): stay modest,
        budget = 12 << 20                     # inside 16 MiB scoped-VMEM default
    nb = max(1, min(target // bytes_per_sample, budget // (4 * bytes_per_sample)))
    nb = int(min(nb, n))
    steps = int(pl.cdiv(n, nb))
    if num_cores > 1 and steps > 1:
        # Round to an even step count so neither v7x TC idles a full step, but
        # never shrink blocks below ~2 MiB just for the split.
        steps_even = num_cores * int(pl.cdiv(steps, num_cores))
        nb_even = int(pl.cdiv(n, steps_even))
        if nb_even * bytes_per_sample >= min(2 << 20, nb * bytes_per_sample):
            nb = nb_even
            steps = int(pl.cdiv(n, nb))
    return nb, steps


def custom_se_block(x, w, b, *, block_batch=None):
    """x: (N, C, H, W); w: (C,) 1x1-conv weight (out_channels=1); b: () bias."""
    N, C, H, W = x.shape
    HW = H * W
    itemsize = jnp.dtype(x.dtype).itemsize
    inv_hw = 1.0 / float(HW)
    b1 = b.astype(jnp.float32).reshape(1)

    lane_aligned = (HW % 128 == 0)
    if lane_aligned:
        x_in = x.reshape(N, C, HW)
        w_in = w.astype(jnp.float32).reshape(1, C)
        kernel = functools.partial(_se_kernel_chw, inv_hw)
        sample_tail = (C, HW)
        w_block = (1, C)
        w_index = lambda i: (0, 0)
    else:
        # Lane-dense flattened layout: avoids masked partial stores when HW is
        # not a multiple of 128 (7x7, 14x14, ...). The broadcast weight is a
        # tiny one-off wrapper op (C*HW elements), unscaled (1/HW stays in-kernel).
        x_in = x.reshape(N, 1, C * HW)
        w_in = jnp.repeat(w.astype(jnp.float32), HW).reshape(1, 1, C * HW)
        kernel = functools.partial(_se_kernel_flat, inv_hw)
        sample_tail = (1, C * HW)
        w_block = (1, 1, C * HW)
        w_index = lambda i: (0, 0, 0)

    bytes_per_sample = C * HW * itemsize
    nb, steps = _pick_tiling(N, bytes_per_sample)
    if block_batch is not None:              # test hook: force a block batch
        nb = int(min(block_batch, N))
        steps = int(pl.cdiv(N, nb))

    block_shape = (nb,) + sample_tail
    x_index = lambda i: (i, 0, 0)

    # Explicit scoped-VMEM limit derived from the chosen block size:
    # in + out, double-buffered, plus the weight tile and slack for temporaries.
    w_bytes = int(w_in.size) * 4
    block_bytes = nb * bytes_per_sample
    vmem_limit = max(4 * block_bytes + 2 * w_bytes + (4 << 20), 16 << 20)

    cost = pl.CostEstimate(
        flops=3 * N * C * HW,                 # reduce + weight mul + gating mul
        transcendentals=N,                    # one sigmoid per sample
        bytes_accessed=2 * N * C * HW * itemsize + w_bytes + 4,
    )

    out = pl.pallas_call(
        kernel,
        out_shape=jax.ShapeDtypeStruct(x_in.shape, x.dtype),
        grid_spec=pltpu.PrefetchScalarGridSpec(
            num_scalar_prefetch=0,
            grid=(steps,),
            in_specs=[
                pl.BlockSpec(block_shape, x_index),
                pl.BlockSpec(w_block, w_index),
                pl.BlockSpec(memory_space=pltpu.MemorySpace.SMEM),
            ],
            out_specs=pl.BlockSpec(block_shape, x_index),
        ),
        compiler_params=pltpu.CompilerParams(
            dimension_semantics=("parallel",),
            vmem_limit_bytes=int(vmem_limit)),
        cost_estimate=cost,
    )(x_in, w_in, b1)
    return out.reshape(N, C, H, W)


if __name__ == "__main__":
    in_channels = 192   # matches the PyTorch script's global

    key = jax.random.PRNGKey(0)
    kx, kw, kb = jax.random.split(key, 3)

    def reference(x, w, b):
        scale = jnp.mean(x, axis=(2, 3), keepdims=True)                   # (N,C,1,1)
        scale = jnp.sum(scale * w[None, :, None, None], axis=1,
                        keepdims=True) + b                                # (N,1,1,1)
        return x * jax.nn.sigmoid(scale)

    # Deterministic synthetic init for Conv2d(in_channels, 1, kernel_size=1).
    w = jax.random.normal(kw, (in_channels,), dtype=jnp.float32) * 0.05
    b = jax.random.normal(kb, (), dtype=jnp.float32) * 0.05

    # Primary run: lane-aligned HW (16x16 = 256).
    x = jax.random.normal(kx, (2, in_channels, 16, 16), dtype=jnp.float32)
    out = jax.block_until_ready(custom_se_block(x, w, b))
    ref = reference(x, w, b)
    assert jnp.allclose(out, ref, atol=1e-5, rtol=1e-5), "mismatch (aligned path)"

    # Secondary check: non-128-multiple H*W (lane-dense flattened path) with a
    # ragged batch grid (N=3, block batch 2 -> masked last block).
    x2 = jax.random.normal(kx, (3, in_channels, 7, 7), dtype=jnp.float32)
    out2 = jax.block_until_ready(custom_se_block(x2, w, b, block_batch=2))
    ref2 = reference(x2, w, b)
    assert jnp.allclose(out2, ref2, atol=1e-5, rtol=1e-5), "mismatch (flat/ragged path)"

    print("KERNEL_OK")
</pallas_src>

<mosaic_0001>
module attributes {stable_mosaic.version = 11 : i64} {
  func.func @_se_kernel_chw(%arg0: i32, %arg1: memref<2x192x256xf32, #tpu.memory_space<vmem>>, %arg2: memref<1x192xf32, #tpu.memory_space<vmem>>, %arg3: memref<1xf32, #tpu.memory_space<smem>>, %arg4: memref<2x192x256xf32, #tpu.memory_space<vmem>>) attributes {dimension_semantics = [#tpu.dimension_semantics<parallel>], iteration_bounds = array<i64: 1>, scalar_prefetch = 0 : i64, scratch_operands = 0 : i64, tpu.core_type = #tpu.core_type<tc>, window_params = [{transform_indices = @transform_0, window_bounds = array<i64: 2, 192, 256>}, {pipeline_mode = #tpu.pipeline_mode<synchronous>, transform_indices = @transform_1, window_bounds = array<i64: 1, 192>}, {transform_indices = @transform_2, window_bounds = array<i64: 1>}, {transform_indices = @transform_3, window_bounds = array<i64: 2, 192, 256>}]} {
    %c0 = arith.constant 0 : index
    %c0_0 = arith.constant 0 : index
    %c0_1 = arith.constant 0 : index
    %0 = vector.load %arg1[%c0, %c0_0, %c0_1] : memref<2x192x256xf32, #tpu.memory_space<vmem>>, vector<2x192x256xf32>
    %cst = arith.constant dense<0.000000e+00> : vector<2x192xf32>
    %1 = vector.multi_reduction <add>, %0, %cst [2] : vector<2x192x256xf32> to vector<2x192xf32>
    %c0_2 = arith.constant 0 : index
    %c0_3 = arith.constant 0 : index
    %2 = vector.load %arg2[%c0_2, %c0_3] : memref<1x192xf32, #tpu.memory_space<vmem>>, vector<1x192xf32>
    %3 = vector.broadcast %2 : vector<1x192xf32> to vector<2x192xf32>
    %4 = arith.mulf %1, %3 : vector<2x192xf32>
    %cst_4 = arith.constant dense<0.000000e+00> : vector<2xf32>
    %5 = vector.multi_reduction <add>, %4, %cst_4 [1] : vector<2x192xf32> to vector<2xf32>
    %6 = vector.shape_cast %5 : vector<2xf32> to vector<2x1xf32>
    %cst_5 = arith.constant 3.906250e-03 : f32
    %7 = vector.broadcast %cst_5 : f32 to vector<2x1xf32>
    %8 = arith.mulf %6, %7 : vector<2x1xf32>
    %c0_6 = arith.constant 0 : index
    %9 = memref.load %arg3[%c0_6] : memref<1xf32, #tpu.memory_space<smem>>
    %10 = vector.broadcast %9 : f32 to vector<2x1xf32>
    %11 = arith.addf %8, %10 : vector<2x1xf32>
    %12 = arith.negf %11 : vector<2x1xf32>
    %13 = math.exp %12 : vector<2x1xf32>
    %cst_7 = arith.constant 1.000000e+00 : f32
    %14 = vector.broadcast %cst_7 : f32 to vector<2x1xf32>
    %15 = arith.addf %14, %13 : vector<2x1xf32>
    %16 = arith.divf %14, %15 : vector<2x1xf32>
    %c0_8 = arith.constant 0 : index
    %c0_9 = arith.constant 0 : index
    %c0_10 = arith.constant 0 : index
    %17 = vector.load %arg1[%c0_8, %c0_9, %c0_10] : memref<2x192x256xf32, #tpu.memory_space<vmem>>, vector<2x192x256xf32>
    %18 = vector.shape_cast %16 : vector<2x1xf32> to vector<2x1x1xf32>
    %19 = vector.broadcast %18 : vector<2x1x1xf32> to vector<2x192x256xf32>
    %20 = arith.mulf %17, %19 : vector<2x192x256xf32>
    %c0_11 = arith.constant 0 : index
    %c0_12 = arith.constant 0 : index
    %c0_13 = arith.constant 0 : index
    %21 = vector.load %arg4[%c0_11, %c0_12, %c0_13] : memref<2x192x256xf32, #tpu.memory_space<vmem>>, vector<2x192x256xf32>
    tpu.vector_store %arg4[%c0_11, %c0_12, %c0_13], %20 {strides = array<i32>} : memref<2x192x256xf32, #tpu.memory_space<vmem>>, vector<2x192x256xf32>,
    return
  }
  func.func @transform_0(%arg0: i32) -> (i32, i32, i32) {
    %c0_i32 = arith.constant 0 : i32
    %c0_i32_0 = arith.constant 0 : i32
    %c0_i32_1 = arith.constant 0 : i32
    return %arg0, %c0_i32, %c0_i32_0 : i32, i32, i32
  }
  func.func @transform_1(%arg0: i32) -> (i32, i32) {
    %c0_i32 = arith.constant 0 : i32
    %c0_i32_0 = arith.constant 0 : i32
    %c0_i32_1 = arith.constant 0 : i32
    return %c0_i32, %c0_i32_0 : i32, i32
  }
  func.func @transform_2(%arg0: i32) -> i32 {
    %c0_i32 = arith.constant 0 : i32
    %c0_i32_0 = arith.constant 0 : i32
    return %c0_i32 : i32
  }
  func.func @transform_3(%arg0: i32) -> (i32, i32, i32) {
    %c0_i32 = arith.constant 0 : i32
    %c0_i32_0 = arith.constant 0 : i32
    %c0_i32_1 = arith.constant 0 : i32
    return %arg0, %c0_i32, %c0_i32_0 : i32, i32, i32
  }
}

</mosaic_0001>

<llo_original>
// kernel: tpu_custom_call.1
$region0: #{tpu_custom_call.1}
  #allocation0 [shape = 'u32[]', space=smem, size = 0x4, offset = 0x4, fixed_abs, tag = 'smem constant byte address 0x4 - core index']
  #allocation1 [shape = 'u32[144,128]{1,0:T(1,128)}', space=vmem, size = 0x12000, scoped, tag = 'internal scratch']
  #allocation2 [shape = 'f32[1]{0:T(128)S(6)}', space=smem, size = 0x200, scoped, tag = 'scoped memory for tpu_custom_call.1']
  %s0 = inlined_call_operand.hbm [shape: f32[2,192,256], index: 0, kind: input, shape index: {}]
  %s1 = inlined_call_operand.vmem [shape: f32[1,192], index: 1, kind: input, shape index: {}]
  %s2 = inlined_call_operand.<no memory space> [shape: f32[1], index: 2, kind: input, shape index: {}]
  %s3 = inlined_call_operand.hbm [shape: f32[2,192,256], index: 3, kind: output, shape index: {}]
  %s4 = sld [smem:[#allocation0]]
  $region26: #{tpu_custom_call.1} parent=0
    _
  %s6 = ssub.s32 1, %s4
  %s7 = scalar_select 0, %s6, %s4
  %8 = sst [smem:[#allocation2]] %s2
  $region1: #{tpu_custom_call.1} parent=0
    #allocation3 [shape = 'u8[393216]{0}', space=vmem, size = 0x60000, scoped, tag = 'input window, operand 0, single buffered']
    #allocation4 [shape = 's32[1]{0}', space=sflag, size = 0x4, scoped, tag = 'scoped memory for tpu_custom_call.1']
    #allocation5 [shape = 's32[1]{0}', space=sflag, size = 0x4, scoped, tag = 'scoped memory for tpu_custom_call.1']
    #allocation6 [shape = 'u8[393216]{0}', space=vmem, size = 0x60000, scoped, tag = 'output window, operand 0, single buffered']
    %9 = vsyncpa [#allocation4], 0
    %10 = vsyncpa [#allocation5], 0
    // Predicated region
    $region2: #{tpu_custom_call.1} parent=1 // pred_check
      _
    $region3: #{tpu_custom_call.1} parent=1 // pred_check_branch
      %12 = sbr.rel (0) target = $region5
    $region4: #{tpu_custom_call.1} parent=1 // pred_region
      %s14 = ssub.s32 12288, 12288
      %15 = vsyncadd [#allocation4], %s14
      %s16 = sshll.u32 [#allocation3], 4
      %s17 = int_to_ptr.vmem [resolvable:$true] %s16
      %22 = dma.hbm_to_vmem [thread:$0]  %s0, 12288, %s17, [#allocation4], 256, 256, 16
    $region5: #{tpu_custom_call.1} parent=1 // pred_fallthru
      _
    // Predicated region
    $region6: #{tpu_custom_call.1} parent=1 // pred_check
      _
    $region7: #{tpu_custom_call.1} parent=1 // pred_check_branch
      %24 = sbr.rel (0) target = $region9
    $region8: #{tpu_custom_call.1} parent=1 // pred_region
      _
    $region9: #{tpu_custom_call.1} parent=1 // pred_fallthru
      _
    // Predicated region
    $region10: #{tpu_custom_call.1} parent=1 // pred_check
      _
    $region11: #{tpu_custom_call.1} parent=1 // pred_check_branch
      %26 = sbr.rel (0) target = $region13
    $region12: #{tpu_custom_call.1} parent=1 // pred_region
      _
    $region13: #{tpu_custom_call.1} parent=1 // pred_fallthru
      _
    // Predicated region
    $region14: #{tpu_custom_call.1} parent=1 // pred_check
      _
    $region15: #{tpu_custom_call.1} parent=1 // pred_check_branch
      %28 = sbr.rel (0) target = $region17
    $region16: #{tpu_custom_call.1} parent=1 // pred_region
      %29 = dma.done [#allocation4], 12288
    $region17: #{tpu_custom_call.1} parent=1 // pred_fallthru
      _
    %v30 = vld [vmem:[#allocation3] sm:$0xff]
    %v31 = vld [vmem:[#allocation3 + $0x8] sm:$0xff]
    %v32 = vld [vmem:[#allocation3 + $0x10] sm:$0xff]
    %v33 = vld [vmem:[#allocation3 + $0x18] sm:$0xff]
    %v34 = vld [vmem:[#allocation3 + $0x20] sm:$0xff]
    %v35 = vld [vmem:[#allocation3 + $0x28] sm:$0xff]
    %v36 = vld [vmem:[#allocation3 + $0x30] sm:$0xff]
    %v37 = vld [vmem:[#allocation3 + $0x38] sm:$0xff]
    %v38 = vld [vmem:[#allocation3 + $0x40] sm:$0xff]
    %v39 = vld [vmem:[#allocation3 + $0x48] sm:$0xff]
    %v40 = vld [vmem:[#allocation3 + $0x50] sm:$0xff]
    %v41 = vld [vmem:[#allocation3 + $0x58] sm:$0xff]
    %v42 = vld [vmem:[#allocation3 + $0x60] sm:$0xff]
    %v43 = vld [vmem:[#allocation3 + $0x68] sm:$0xff]
    %v44 = vld [vmem:[#allocation3 + $0x70] sm:$0xff]
    %v45 = vld [vmem:[#allocation3 + $0x78] sm:$0xff]
    %v46 = vld [vmem:[#allocation3 + $0x80] sm:$0xff]
    %v47 = vld [vmem:[#allocation3 + $0x88] sm:$0xff]
    %v48 = vld [vmem:[#allocation3 + $0x90] sm:$0xff]
    %v49 = vld [vmem:[#allocation3 + $0x98] sm:$0xff]
    %v50 = vld [vmem:[#allocation3 + $0xa0] sm:$0xff]
    %v51 = vld [vmem:[#allocation3 + $0xa8] sm:$0xff]
    %v52 = vld [vmem:[#allocation3 + $0xb0] sm:$0xff]
    %v53 = vld [vmem:[#allocation3 + $0xb8] sm:$0xff]
    %v54 = vld [vmem:[#allocation3 + $0xc0] sm:$0xff]
    %v55 = vld [vmem:[#allocation3 + $0xc8] sm:$0xff]
    %v56 = vld [vmem:[#allocation3 + $0xd0] sm:$0xff]
    %v57 = vld [vmem:[#allocation3 + $0xd8] sm:$0xff]
    %v58 = vld [vmem:[#allocation3 + $0xe0] sm:$0xff]
    %v59 = vld [vmem:[#allocation3 + $0xe8] sm:$0xff]
    %v60 = vld [vmem:[#allocation3 + $0xf0] sm:$0xff]
    %v61 = vld [vmem:[#allocation3 + $0xf8] sm:$0xff]
    %v62 = vld [vmem:[#allocation3 + $0x100] sm:$0xff]
    %v63 = vld [vmem:[#allocation3 + $0x108] sm:$0xff]
    %v64 = vld [vmem:[#allocation3 + $0x110] sm:$0xff]
    %v65 = vld [vmem:[#allocation3 + $0x118] sm:$0xff]
    %v66 = vld [vmem:[#allocation3 + $0x120] sm:$0xff]
    %v67 = vld [vmem:[#allocation3 + $0x128] sm:$0xff]
    %v68 = vld [vmem:[#allocation3 + $0x130] sm:$0xff]
    %v69 = vld [vmem:[#allocation3 + $0x138] sm:$0xff]
    %v70 = vld [vmem:[#allocation3 + $0x140] sm:$0xff]
    %v71 = vld [vmem:[#allocation3 + $0x148] sm:$0xff]
    %v72 = vld [vmem:[#allocation3 + $0x150] sm:$0xff]
    %v73 = vld [vmem:[#allocation3 + $0x158] sm:$0xff]
    %v74 = vld [vmem:[#allocation3 + $0x160] sm:$0xff]
    %v75 = vld [vmem:[#allocation3 + $0x168] sm:$0xff]
    %v76 = vld [vmem:[#allocation3 + $0x170] sm:$0xff]
    %v77 = vld [vmem:[#allocation3 + $0x178] sm:$0xff]
    %v78 = vld [vmem:[#allocation3 + $0x180] sm:$0xff]
    %v79 = vld [vmem:[#allocation3 + $0x188] sm:$0xff]
    %v80 = vld [vmem:[#allocation3 + $0x190] sm:$0xff]
    %v81 = vld [vmem:[#allocation3 + $0x198] sm:$0xff]
    %v82 = vld [vmem:[#allocation3 + $0x1a0] sm:$0xff]
    %v83 = vld [vmem:[#allocation3 + $0x1a8] sm:$0xff]
    %v84 = vld [vmem:[#allocation3 + $0x1b0] sm:$0xff]
    %v85 = vld [vmem:[#allocation3 + $0x1b8] sm:$0xff]
    %v86 = vld [vmem:[#allocation3 + $0x1c0] sm:$0xff]
    %v87 = vld [vmem:[#allocation3 + $0x1c8] sm:$0xff]
    %v88 = vld [vmem:[#allocation3 + $0x1d0] sm:$0xff]
    %v89 = vld [vmem:[#allocation3 + $0x1d8] sm:$0xff]
    %v90 = vld [vmem:[#allocation3 + $0x1e0] sm:$0xff]
    %v91 = vld [vmem:[#allocation3 + $0x1e8] sm:$0xff]
    %v92 = vld [vmem:[#allocation3 + $0x1f0] sm:$0xff]
    %v93 = vld [vmem:[#allocation3 + $0x1f8] sm:$0xff]
    %v94 = vld [vmem:[#allocation3 + $0x200] sm:$0xff]
    %v95 = vld [vmem:[#allocation3 + $0x208] sm:$0xff]
    %v96 = vld [vmem:[#allocation3 + $0x210] sm:$0xff]
    %v97 = vld [vmem:[#allocation3 + $0x218] sm:$0xff]
    %v98 = vld [vmem:[#allocation3 + $0x220] sm:$0xff]
    %v99 = vld [vmem:[#allocation3 + $0x228] sm:$0xff]
    %v100 = vld [vmem:[#allocation3 + $0x230] sm:$0xff]
    %v101 = vld [vmem:[#allocation3 + $0x238] sm:$0xff]
    %v102 = vld [vmem:[#allocation3 + $0x240] sm:$0xff]
    %v103 = vld [vmem:[#allocation3 + $0x248] sm:$0xff]
    %v104 = vld [vmem:[#allocation3 + $0x250] sm:$0xff]
    %v105 = vld [vmem:[#allocation3 + $0x258] sm:$0xff]
    %v106 = vld [vmem:[#allocation3 + $0x260] sm:$0xff]
    %v107 = vld [vmem:[#allocation3 + $0x268] sm:$0xff]
    %v108 = vld [vmem:[#allocation3 + $0x270] sm:$0xff]
    %v109 = vld [vmem:[#allocation3 + $0x278] sm:$0xff]
    %v110 = vld [vmem:[#allocation3 + $0x280] sm:$0xff]
    %v111 = vld [vmem:[#allocation3 + $0x288] sm:$0xff]
    %v112 = vld [vmem:[#allocation3 + $0x290] sm:$0xff]
    %v113 = vld [vmem:[#allocation3 + $0x298] sm:$0xff]
    %v114 = vld [vmem:[#allocation3 + $0x2a0] sm:$0xff]
    %v115 = vld [vmem:[#allocation3 + $0x2a8] sm:$0xff]
    %v116 = vld [vmem:[#allocation3 + $0x2b0] sm:$0xff]
    %v117 = vld [vmem:[#allocation3 + $0x2b8] sm:$0xff]
    %v118 = vld [vmem:[#allocation3 + $0x2c0] sm:$0xff]
    %v119 = vld [vmem:[#allocation3 + $0x2c8] sm:$0xff]
    %v120 = vld [vmem:[#allocation3 + $0x2d0] sm:$0xff]
    %v121 = vld [vmem:[#allocation3 + $0x2d8] sm:$0xff]
    %v122 = vld [vmem:[#allocation3 + $0x2e0] sm:$0xff]
    %v123 = vld [vmem:[#allocation3 + $0x2e8] sm:$0xff]
    %v124 = vld [vmem:[#allocation3 + $0x2f0] sm:$0xff]
    %v125 = vld [vmem:[#allocation3 + $0x2f8] sm:$0xff]
    %v126 = vadd.f32 %v30, %v31
    %127 = vadd.xlane.f32.xlu0 %v126
    %v128 = vpop.xlane.xlu0 %127
    %v129 = vadd.f32 %v32, %v33
    %130 = vadd.xlane.f32.xlu0 %v129
    %v131 = vpop.xlane.xlu0 %130
    %v132 = vadd.f32 %v34, %v35
    %133 = vadd.xlane.f32.xlu0 %v132
    %v134 = vpop.xlane.xlu0 %133
    %v135 = vadd.f32 %v36, %v37
    %136 = vadd.xlane.f32.xlu0 %v135
    %v137 = vpop.xlane.xlu0 %136
    %v138 = vadd.f32 %v38, %v39
    %139 = vadd.xlane.f32.xlu0 %v138
    %v140 = vpop.xlane.xlu0 %139
    %v141 = vadd.f32 %v40, %v41
    %142 = vadd.xlane.f32.xlu0 %v141
    %v143 = vpop.xlane.xlu0 %142
    %v144 = vadd.f32 %v42, %v43
    %145 = vadd.xlane.f32.xlu0 %v144
    %v146 = vpop.xlane.xlu0 %145
    %v147 = vadd.f32 %v44, %v45
    %148 = vadd.xlane.f32.xlu0 %v147
    %v149 = vpop.xlane.xlu0 %148
    %v150 = vadd.f32 %v46, %v47
    %151 = vadd.xlane.f32.xlu0 %v150
    %v152 = vpop.xlane.xlu0 %151
    %v153 = vadd.f32 %v48, %v49
    %154 = vadd.xlane.f32.xlu0 %v153
    %v155 = vpop.xlane.xlu0 %154
    %v156 = vadd.f32 %v50, %v51
    %157 = vadd.xlane.f32.xlu0 %v156
    %v158 = vpop.xlane.xlu0 %157
    %v159 = vadd.f32 %v52, %v53
    %160 = vadd.xlane.f32.xlu0 %v159
    %v161 = vpop.xlane.xlu0 %160
    %v162 = vadd.f32 %v54, %v55
    %163 = vadd.xlane.f32.xlu0 %v162
    %v164 = vpop.xlane.xlu0 %163
    %v165 = vadd.f32 %v56, %v57
    %166 = vadd.xlane.f32.xlu0 %v165
    %v167 = vpop.xlane.xlu0 %166
    %v168 = vadd.f32 %v58, %v59
    %169 = vadd.xlane.f32.xlu0 %v168
    %v170 = vpop.xlane.xlu0 %169
    %v171 = vadd.f32 %v60, %v61
    %172 = vadd.xlane.f32.xlu0 %v171
    %v173 = vpop.xlane.xlu0 %172
    %v174 = vadd.f32 %v62, %v63
    %175 = vadd.xlane.f32.xlu0 %v174
    %v176 = vpop.xlane.xlu0 %175
    %v177 = vadd.f32 %v64, %v65
    %178 = vadd.xlane.f32.xlu0 %v177
    %v179 = vpop.xlane.xlu0 %178
    %v180 = vadd.f32 %v66, %v67
    %181 = vadd.xlane.f32.xlu0 %v180
    %v182 = vpop.xlane.xlu0 %181
    %v183 = vadd.f32 %v68, %v69
    %184 = vadd.xlane.f32.xlu0 %v183
    %v185 = vpop.xlane.xlu0 %184
    %v186 = vadd.f32 %v70, %v71
    %187 = vadd.xlane.f32.xlu0 %v186
    %v188 = vpop.xlane.xlu0 %187
    %v189 = vadd.f32 %v72, %v73
    %190 = vadd.xlane.f32.xlu0 %v189
    %v191 = vpop.xlane.xlu0 %190
    %v192 = vadd.f32 %v74, %v75
    %193 = vadd.xlane.f32.xlu0 %v192
    %v194 = vpop.xlane.xlu0 %193
    %v195 = vadd.f32 %v76, %v77
    %196 = vadd.xlane.f32.xlu0 %v195
    %v197 = vpop.xlane.xlu0 %196
    %v198 = vadd.f32 %v78, %v79
    %199 = vadd.xlane.f32.xlu0 %v198
    %v200 = vpop.xlane.xlu0 %199
    %v201 = vadd.f32 %v80, %v81
    %202 = vadd.xlane.f32.xlu0 %v201
    %v203 = vpop.xlane.xlu0 %202
    %v204 = vadd.f32 %v82, %v83
    %205 = vadd.xlane.f32.xlu0 %v204
    %v206 = vpop.xlane.xlu0 %205
    %v207 = vadd.f32 %v84, %v85
    %208 = vadd.xlane.f32.xlu0 %v207
    %v209 = vpop.xlane.xlu0 %208
    %v210 = vadd.f32 %v86, %v87
    %211 = vadd.xlane.f32.xlu0 %v210
    %v212 = vpop.xlane.xlu0 %211
    %v213 = vadd.f32 %v88, %v89
    %214 = vadd.xlane.f32.xlu0 %v213
    %v215 = vpop.xlane.xlu0 %214
    %v216 = vadd.f32 %v90, %v91
    %217 = vadd.xlane.f32.xlu0 %v216
    %v218 = vpop.xlane.xlu0 %217
    %v219 = vadd.f32 %v92, %v93
    %220 = vadd.xlane.f32.xlu0 %v219
    %v221 = vpop.xlane.xlu0 %220
    %v222 = vadd.f32 %v94, %v95
    %223 = vadd.xlane.f32.xlu0 %v222
    %v224 = vpop.xlane.xlu0 %223
    %v225 = vadd.f32 %v96, %v97
    %226 = vadd.xlane.f32.xlu0 %v225
    %v227 = vpop.xlane.xlu0 %226
    %v228 = vadd.f32 %v98, %v99
    %229 = vadd.xlane.f32.xlu0 %v228
    %v230 = vpop.xlane.xlu0 %229
    %v231 = vadd.f32 %v100, %v101
    %232 = vadd.xlane.f32.xlu0 %v231
    %v233 = vpop.xlane.xlu0 %232
    %v234 = vadd.f32 %v102, %v103
    %235 = vadd.xlane.f32.xlu0 %v234
    %v236 = vpop.xlane.xlu0 %235
    %v237 = vadd.f32 %v104, %v105
    %238 = vadd.xlane.f32.xlu0 %v237
    %v239 = vpop.xlane.xlu0 %238
    %v240 = vadd.f32 %v106, %v107
    %241 = vadd.xlane.f32.xlu0 %v240
    %v242 = vpop.xlane.xlu0 %241
    %v243 = vadd.f32 %v108, %v109
    %244 = vadd.xlane.f32.xlu0 %v243
    %v245 = vpop.xlane.xlu0 %244
    %v246 = vadd.f32 %v110, %v111
    %247 = vadd.xlane.f32.xlu0 %v246
    %v248 = vpop.xlane.xlu0 %247
    %v249 = vadd.f32 %v112, %v113
    %250 = vadd.xlane.f32.xlu0 %v249
    %v251 = vpop.xlane.xlu0 %250
    %v252 = vadd.f32 %v114, %v115
    %253 = vadd.xlane.f32.xlu0 %v252
    %v254 = vpop.xlane.xlu0 %253
    %v255 = vadd.f32 %v116, %v117
    %256 = vadd.xlane.f32.xlu0 %v255
    %v257 = vpop.xlane.xlu0 %256
    %v258 = vadd.f32 %v118, %v119
    %259 = vadd.xlane.f32.xlu0 %v258
    %v260 = vpop.xlane.xlu0 %259
    %v261 = vadd.f32 %v120, %v121
    %262 = vadd.xlane.f32.xlu0 %v261
    %v263 = vpop.xlane.xlu0 %262
    %v264 = vadd.f32 %v122, %v123
    %265 = vadd.xlane.f32.xlu0 %v264
    %v266 = vpop.xlane.xlu0 %265
    %v267 = vadd.f32 %v124, %v125
    %268 = vadd.xlane.f32.xlu0 %v267
    %v269 = vpop.xlane.xlu0 %268
    %v270 = vld [vmem:[%s1] sm:$0x3]
    %v272 = vlaneseq
    %v273 = vshrl.u32 %v272, 7
    %v274 = vsub.s32 0, %v273
    %v275 = vrot.slane %v270, %v274
    %v276 = vlaneseq
    %v277 = vshrl.u32 %v276, 7
    %v278 = vsub.s32 1, %v277
    %v279 = vrot.slane %v270, %v278
    %281 = vbcast.lane.b32.xlu0 %v275, 256
    %v282 = vpop.permute.xlu0 %281
    %s284 = sor.u32 256, 8
    %285 = vbcast.lane.b32.xlu0 %v275, %s284
    %v286 = vpop.permute.xlu0 %285
    %s288 = sor.u32 256, 16
    %289 = vbcast.lane.b32.xlu0 %v275, %s288
    %v290 = vpop.permute.xlu0 %289
    %s292 = sor.u32 256, 24
    %293 = vbcast.lane.b32.xlu0 %v275, %s292
    %v294 = vpop.permute.xlu0 %293
    %s296 = sor.u32 256, 32
    %297 = vbcast.lane.b32.xlu0 %v275, %s296
    %v298 = vpop.permute.xlu0 %297
    %s300 = sor.u32 256, 40
    %301 = vbcast.lane.b32.xlu0 %v275, %s300
    %v302 = vpop.permute.xlu0 %301
    %s304 = sor.u32 256, 48
    %305 = vbcast.lane.b32.xlu0 %v275, %s304
    %v306 = vpop.permute.xlu0 %305
    %s308 = sor.u32 256, 56
    %309 = vbcast.lane.b32.xlu0 %v275, %s308
    %v310 = vpop.permute.xlu0 %309
    %s312 = sor.u32 256, 64
    %313 = vbcast.lane.b32.xlu0 %v275, %s312
    %v314 = vpop.permute.xlu0 %313
    %s316 = sor.u32 256, 72
    %317 = vbcast.lane.b32.xlu0 %v275, %s316
    %v318 = vpop.permute.xlu0 %317
    %s320 = sor.u32 256, 80
    %321 = vbcast.lane.b32.xlu0 %v275, %s320
    %v322 = vpop.permute.xlu0 %321
    %s324 = sor.u32 256, 88
    %325 = vbcast.lane.b32.xlu0 %v275, %s324
    %v326 = vpop.permute.xlu0 %325
    %s328 = sor.u32 256, 96
    %329 = vbcast.lane.b32.xlu0 %v275, %s328
    %v330 = vpop.permute.xlu0 %329
    %s332 = sor.u32 256, 104
    %333 = vbcast.lane.b32.xlu0 %v275, %s332
    %v334 = vpop.permute.xlu0 %333
    %s336 = sor.u32 256, 112
    %337 = vbcast.lane.b32.xlu0 %v275, %s336
    %v338 = vpop.permute.xlu0 %337
    %s340 = sor.u32 256, 120
    %341 = vbcast.lane.b32.xlu0 %v275, %s340
    %v342 = vpop.permute.xlu0 %341
    %344 = vbcast.lane.b32.xlu0 %v279, 256
    %v345 = vpop.permute.xlu0 %344
    %s347 = sor.u32 256, 8
    %348 = vbcast.lane.b32.xlu0 %v279, %s347
    %v349 = vpop.permute.xlu0 %348
    %s351 = sor.u32 256, 16
    %352 = vbcast.lane.b32.xlu0 %v279, %s351
    %v353 = vpop.permute.xlu0 %352
    %s355 = sor.u32 256, 24
    %356 = vbcast.lane.b32.xlu0 %v279, %s355
    %v357 = vpop.permute.xlu0 %356
    %s359 = sor.u32 256, 32
    %360 = vbcast.lane.b32.xlu0 %v279, %s359
    %v361 = vpop.permute.xlu0 %360
    %s363 = sor.u32 256, 40
    %364 = vbcast.lane.b32.xlu0 %v279, %s363
    %v365 = vpop.permute.xlu0 %364
    %s367 = sor.u32 256, 48
    %368 = vbcast.lane.b32.xlu0 %v279, %s367
    %v369 = vpop.permute.xlu0 %368
    %s371 = sor.u32 256, 56
    %372 = vbcast.lane.b32.xlu0 %v279, %s371
    %v373 = vpop.permute.xlu0 %372
    %v398 = vmul.f32 %v128, %v282
    %v399 = vmul.f32 %v131, %v286
    %v400 = vmul.f32 %v134, %v290
    %v401 = vmul.f32 %v137, %v294
    %v402 = vmul.f32 %v140, %v298
    %v403 = vmul.f32 %v143, %v302
    %v404 = vmul.f32 %v146, %v306
    %v405 = vmul.f32 %v149, %v310
    %v406 = vmul.f32 %v152, %v314
    %v407 = vmul.f32 %v155, %v318
    %v408 = vmul.f32 %v158, %v322
    %v409 = vmul.f32 %v161, %v326
    %v410 = vmul.f32 %v164, %v330
    %v411 = vmul.f32 %v167, %v334
    %v412 = vmul.f32 %v170, %v338
    %v413 = vmul.f32 %v173, %v342
    %v414 = vmul.f32 %v176, %v345
    %v415 = vmul.f32 %v179, %v349
    %v416 = vmul.f32 %v182, %v353
    %v417 = vmul.f32 %v185, %v357
    %v418 = vmul.f32 %v188, %v361
    %v419 = vmul.f32 %v191, %v365
    %v420 = vmul.f32 %v194, %v369
    %v421 = vmul.f32 %v197, %v373
    %v422 = vmul.f32 %v200, %v282
    %v423 = vmul.f32 %v203, %v286
    %v424 = vmul.f32 %v206, %v290
    %v425 = vmul.f32 %v209, %v294
    %v426 = vmul.f32 %v212, %v298
    %v427 = vmul.f32 %v215, %v302
    %v428 = vmul.f32 %v218, %v306
    %v429 = vmul.f32 %v221, %v310
    %v430 = vmul.f32 %v224, %v314
    %v431 = vmul.f32 %v227, %v318
    %v432 = vmul.f32 %v230, %v322
    %v433 = vmul.f32 %v233, %v326
    %v434 = vmul.f32 %v236, %v330
    %v435 = vmul.f32 %v239, %v334
    %v436 = vmul.f32 %v242, %v338
    %v437 = vmul.f32 %v245, %v342
    %v438 = vmul.f32 %v248, %v345
    %v439 = vmul.f32 %v251, %v349
    %v440 = vmul.f32 %v254, %v353
    %v441 = vmul.f32 %v257, %v357
    %v442 = vmul.f32 %v260, %v361
    %v443 = vmul.f32 %v263, %v365
    %v444 = vmul.f32 %v266, %v369
    %v445 = vmul.f32 %v269, %v373
    %494 = vset.pattern.permute.xlu0 0
    %495 = vperm.xlu0 %494, %v398
    %v496 = vpop.permute.xlu0 %495
    %497 = vset.pattern.permute.xlu0 0
    %498 = vperm.xlu0 %497, %v399
    %v499 = vpop.permute.xlu0 %498
    %500 = vset.pattern.permute.xlu0 0
    %501 = vperm.xlu0 %500, %v400
    %v502 = vpop.permute.xlu0 %501
    %503 = vset.pattern.permute.xlu0 0
    %504 = vperm.xlu0 %503, %v401
    %v505 = vpop.permute.xlu0 %504
    %506 = vset.pattern.permute.xlu0 0
    %507 = vperm.xlu0 %506, %v402
    %v508 = vpop.permute.xlu0 %507
    %509 = vset.pattern.permute.xlu0 0
    %510 = vperm.xlu0 %509, %v403
    %v511 = vpop.permute.xlu0 %510
    %512 = vset.pattern.permute.xlu0 0
    %513 = vperm.xlu0 %512, %v404
    %v514 = vpop.permute.xlu0 %513
    %515 = vset.pattern.permute.xlu0 0
    %516 = vperm.xlu0 %515, %v405
    %v517 = vpop.permute.xlu0 %516
    %518 = vset.pattern.permute.xlu0 0
    %519 = vperm.xlu0 %518, %v406
    %v520 = vpop.permute.xlu0 %519
    %521 = vset.pattern.permute.xlu0 0
    %522 = vperm.xlu0 %521, %v407
    %v523 = vpop.permute.xlu0 %522
    %524 = vset.pattern.permute.xlu0 0
    %525 = vperm.xlu0 %524, %v408
    %v526 = vpop.permute.xlu0 %525
    %527 = vset.pattern.permute.xlu0 0
    %528 = vperm.xlu0 %527, %v409
    %v529 = vpop.permute.xlu0 %528
    %530 = vset.pattern.permute.xlu0 0
    %531 = vperm.xlu0 %530, %v410
    %v532 = vpop.permute.xlu0 %531
    %533 = vset.pattern.permute.xlu0 0
    %534 = vperm.xlu0 %533, %v411
    %v535 = vpop.permute.xlu0 %534
    %536 = vset.pattern.permute.xlu0 0
    %537 = vperm.xlu0 %536, %v412
    %v538 = vpop.permute.xlu0 %537
    %539 = vset.pattern.permute.xlu0 0
    %540 = vperm.xlu0 %539, %v413
    %v541 = vpop.permute.xlu0 %540
    %542 = vset.pattern.permute.xlu0 0
    %543 = vperm.xlu0 %542, %v414
    %v544 = vpop.permute.xlu0 %543
    %545 = vset.pattern.permute.xlu0 0
    %546 = vperm.xlu0 %545, %v415
    %v547 = vpop.permute.xlu0 %546
    %548 = vset.pattern.permute.xlu0 0
    %549 = vperm.xlu0 %548, %v416
    %v550 = vpop.permute.xlu0 %549
    %551 = vset.pattern.permute.xlu0 0
    %552 = vperm.xlu0 %551, %v417
    %v553 = vpop.permute.xlu0 %552
    %554 = vset.pattern.permute.xlu0 0
    %555 = vperm.xlu0 %554, %v418
    %v556 = vpop.permute.xlu0 %555
    %557 = vset.pattern.permute.xlu0 0
    %558 = vperm.xlu0 %557, %v419
    %v559 = vpop.permute.xlu0 %558
    %560 = vset.pattern.permute.xlu0 0
    %561 = vperm.xlu0 %560, %v420
    %v562 = vpop.permute.xlu0 %561
    %563 = vset.pattern.permute.xlu0 0
    %564 = vperm.xlu0 %563, %v421
    %v565 = vpop.permute.xlu0 %564
    %566 = vset.pattern.permute.xlu0 0
    %567 = vperm.xlu0 %566, %v422
    %v568 = vpop.permute.xlu0 %567
    %569 = vset.pattern.permute.xlu0 0
    %570 = vperm.xlu0 %569, %v423
    %v571 = vpop.permute.xlu0 %570
    %572 = vset.pattern.permute.xlu0 0
    %573 = vperm.xlu0 %572, %v424
    %v574 = vpop.permute.xlu0 %573
    %575 = vset.pattern.permute.xlu0 0
    %576 = vperm.xlu0 %575, %v425
    %v577 = vpop.permute.xlu0 %576
    %578 = vset.pattern.permute.xlu0 0
    %579 = vperm.xlu0 %578, %v426
    %v580 = vpop.permute.xlu0 %579
    %581 = vset.pattern.permute.xlu0 0
    %582 = vperm.xlu0 %581, %v427
    %v583 = vpop.permute.xlu0 %582
    %584 = vset.pattern.permute.xlu0 0
    %585 = vperm.xlu0 %584, %v428
    %v586 = vpop.permute.xlu0 %585
    %587 = vset.pattern.permute.xlu0 0
    %588 = vperm.xlu0 %587, %v429
    %v589 = vpop.permute.xlu0 %588
    %590 = vset.pattern.permute.xlu0 0
    %591 = vperm.xlu0 %590, %v430
    %v592 = vpop.permute.xlu0 %591
    %593 = vset.pattern.permute.xlu0 0
    %594 = vperm.xlu0 %593, %v431
    %v595 = vpop.permute.xlu0 %594
    %596 = vset.pattern.permute.xlu0 0
    %597 = vperm.xlu0 %596, %v432
    %v598 = vpop.permute.xlu0 %597
    %599 = vset.pattern.permute.xlu0 0
    %600 = vperm.xlu0 %599, %v433
    %v601 = vpop.permute.xlu0 %600
    %602 = vset.pattern.permute.xlu0 0
    %603 = vperm.xlu0 %602, %v434
    %v604 = vpop.permute.xlu0 %603
    %605 = vset.pattern.permute.xlu0 0
    %606 = vperm.xlu0 %605, %v435
    %v607 = vpop.permute.xlu0 %606
    %608 = vset.pattern.permute.xlu0 0
    %609 = vperm.xlu0 %608, %v436
    %v610 = vpop.permute.xlu0 %609
    %611 = vset.pattern.permute.xlu0 0
    %612 = vperm.xlu0 %611, %v437
    %v613 = vpop.permute.xlu0 %612
    %614 = vset.pattern.permute.xlu0 0
    %615 = vperm.xlu0 %614, %v438
    %v616 = vpop.permute.xlu0 %615
    %617 = vset.pattern.permute.xlu0 0
    %618 = vperm.xlu0 %617, %v439
    %v619 = vpop.permute.xlu0 %618
    %620 = vset.pattern.permute.xlu0 0
    %621 = vperm.xlu0 %620, %v440
    %v622 = vpop.permute.xlu0 %621
    %623 = vset.pattern.permute.xlu0 0
    %624 = vperm.xlu0 %623, %v441
    %v625 = vpop.permute.xlu0 %624
    %626 = vset.pattern.permute.xlu0 0
    %627 = vperm.xlu0 %626, %v442
    %v628 = vpop.permute.xlu0 %627
    %629 = vset.pattern.permute.xlu0 0
    %630 = vperm.xlu0 %629, %v443
    %v631 = vpop.permute.xlu0 %630
    %632 = vset.pattern.permute.xlu0 0
    %633 = vperm.xlu0 %632, %v444
    %v634 = vpop.permute.xlu0 %633
    %635 = vset.pattern.permute.xlu0 0
    %636 = vperm.xlu0 %635, %v445
    %v637 = vpop.permute.xlu0 %636
    %v638 = vlaneseq
    %v639 = vand.u32 %v638, 127
    %v640 = vlaneseq
    %v641 = vshrl.u32 %v640, 7
    %v642 = vsub.s32 %v639, %v641
    %v643 = vrot.slane %v496, %v642
    %v644 = vadd.s32 %v639, 4294967288
    %v645 = vlaneseq
    %v646 = vshrl.u32 %v645, 7
    %v647 = vsub.s32 %v644, %v646
    %v648 = vrot.slane %v499, %v647
    %vm649 = vcmask 130112
    %v650 = vsel %vm649, %v648, %v643
    %v651 = vadd.s32 %v639, 4294967280
    %v652 = vlaneseq
    %v653 = vshrl.u32 %v652, 7
    %v654 = vsub.s32 %v651, %v653
    %v655 = vrot.slane %v502, %v654
    %vm656 = vcmask 195712
    %v657 = vsel %vm656, %v655, %v650
    %v658 = vadd.s32 %v639, 4294967272
    %v659 = vlaneseq
    %v660 = vshrl.u32 %v659, 7
    %v661 = vsub.s32 %v658, %v660
    %v662 = vrot.slane %v505, %v661
    %vm663 = vcmask 261312
    %v664 = vsel %vm663, %v662, %v657
    %v665 = vadd.s32 %v639, 4294967264
    %v666 = vlaneseq
    %v667 = vshrl.u32 %v666, 7
    %v668 = vsub.s32 %v665, %v667
    %v669 = vrot.slane %v508, %v668
    %vm670 = vcmask 326912
    %v671 = vsel %vm670, %v669, %v664
    %v672 = vadd.s32 %v639, 4294967256
    %v673 = vlaneseq
    %v674 = vshrl.u32 %v673, 7
    %v675 = vsub.s32 %v672, %v674
    %v676 = vrot.slane %v511, %v675
    %vm677 = vcmask 392512
    %v678 = vsel %vm677, %v676, %v671
    %v679 = vadd.s32 %v639, 4294967248
    %v680 = vlaneseq
    %v681 = vshrl.u32 %v680, 7
    %v682 = vsub.s32 %v679, %v681
    %v683 = vrot.slane %v514, %v682
    %vm684 = vcmask 458112
    %v685 = vsel %vm684, %v683, %v678
    %v686 = vadd.s32 %v639, 4294967240
    %v687 = vlaneseq
    %v688 = vshrl.u32 %v687, 7
    %v689 = vsub.s32 %v686, %v688
    %v690 = vrot.slane %v517, %v689
    %vm691 = vcmask 523712
    %v692 = vsel %vm691, %v690, %v685
    %v693 = vadd.s32 %v639, 4294967232
    %v694 = vlaneseq
    %v695 = vshrl.u32 %v694, 7
    %v696 = vsub.s32 %v693, %v695
    %v697 = vrot.slane %v520, %v696
    %vm698 = vcmask 589312
    %v699 = vsel %vm698, %v697, %v692
    %v700 = vadd.s32 %v639, 4294967224
    %v701 = vlaneseq
    %v702 = vshrl.u32 %v701, 7
    %v703 = vsub.s32 %v700, %v702
    %v704 = vrot.slane %v523, %v703
    %vm705 = vcmask 654912
    %v706 = vsel %vm705, %v704, %v699
    %v707 = vadd.s32 %v639, 4294967216
    %v708 = vlaneseq
    %v709 = vshrl.u32 %v708, 7
    %v710 = vsub.s32 %v707, %v709
    %v711 = vrot.slane %v526, %v710
    %vm712 = vcmask 720512
    %v713 = vsel %vm712, %v711, %v706
    %v714 = vadd.s32 %v639, 4294967208
    %v715 = vlaneseq
    %v716 = vshrl.u32 %v715, 7
    %v717 = vsub.s32 %v714, %v716
    %v718 = vrot.slane %v529, %v717
    %vm719 = vcmask 786112
    %v720 = vsel %vm719, %v718, %v713
    %v721 = vadd.s32 %v639, 4294967200
    %v722 = vlaneseq
    %v723 = vshrl.u32 %v722, 7
    %v724 = vsub.s32 %v721, %v723
    %v725 = vrot.slane %v532, %v724
    %vm726 = vcmask 851712
    %v727 = vsel %vm726, %v725, %v720
    %v728 = vadd.s32 %v639, 4294967192
    %v729 = vlaneseq
    %v730 = vshrl.u32 %v729, 7
    %v731 = vsub.s32 %v728, %v730
    %v732 = vrot.slane %v535, %v731
    %vm733 = vcmask 917312
    %v734 = vsel %vm733, %v732, %v727
    %v735 = vadd.s32 %v639, 4294967184
    %v736 = vlaneseq
    %v737 = vshrl.u32 %v736, 7
    %v738 = vsub.s32 %v735, %v737
    %v739 = vrot.slane %v538, %v738
    %vm740 = vcmask 982912
    %v741 = vsel %vm740, %v739, %v734
    %v742 = vadd.s32 %v639, 4294967176
    %v743 = vlaneseq
    %v744 = vshrl.u32 %v743, 7
    %v745 = vsub.s32 %v742, %v744
    %v746 = vrot.slane %v541, %v745
    %vm747 = vcmask 1048512
    %v748 = vsel %vm747, %v746, %v741
    %v749 = vlaneseq
    %v750 = vshrl.u32 %v749, 7
    %v751 = vsub.s32 %v639, %v750
    %v752 = vrot.slane %v544, %v751
    %v753 = vlaneseq
    %v754 = vshrl.u32 %v753, 7
    %v755 = vsub.s32 %v644, %v754
    %v756 = vrot.slane %v547, %v755
    %v757 = vsel %vm649, %v756, %v752
    %v758 = vlaneseq
    %v759 = vshrl.u32 %v758, 7
    %v760 = vsub.s32 %v651, %v759
    %v761 = vrot.slane %v550, %v760
    %v762 = vsel %vm656, %v761, %v757
    %v763 = vlaneseq
    %v764 = vshrl.u32 %v763, 7
    %v765 = vsub.s32 %v658, %v764
    %v766 = vrot.slane %v553, %v765
    %v767 = vsel %vm663, %v766, %v762
    %v768 = vlaneseq
    %v769 = vshrl.u32 %v768, 7
    %v770 = vsub.s32 %v665, %v769
    %v771 = vrot.slane %v556, %v770
    %v772 = vsel %vm670, %v771, %v767
    %v773 = vlaneseq
    %v774 = vshrl.u32 %v773, 7
    %v775 = vsub.s32 %v672, %v774
    %v776 = vrot.slane %v559, %v775
    %v777 = vsel %vm677, %v776, %v772
    %v778 = vlaneseq
    %v779 = vshrl.u32 %v778, 7
    %v780 = vsub.s32 %v679, %v779
    %v781 = vrot.slane %v562, %v780
    %v782 = vsel %vm684, %v781, %v777
    %v783 = vlaneseq
    %v784 = vshrl.u32 %v783, 7
    %v785 = vsub.s32 %v686, %v784
    %v786 = vrot.slane %v565, %v785
    %v787 = vsel %vm691, %v786, %v782
    %v788 = vlaneseq
    %v789 = vshrl.u32 %v788, 7
    %v790 = vsub.s32 %v639, %v789
    %v791 = vrot.slane %v568, %v790
    %v792 = vlaneseq
    %v793 = vshrl.u32 %v792, 7
    %v794 = vsub.s32 %v644, %v793
    %v795 = vrot.slane %v571, %v794
    %v796 = vsel %vm649, %v795, %v791
    %v797 = vlaneseq
    %v798 = vshrl.u32 %v797, 7
    %v799 = vsub.s32 %v651, %v798
    %v800 = vrot.slane %v574, %v799
    %v801 = vsel %vm656, %v800, %v796
    %v802 = vlaneseq
    %v803 = vshrl.u32 %v802, 7
    %v804 = vsub.s32 %v658, %v803
    %v805 = vrot.slane %v577, %v804
    %v806 = vsel %vm663, %v805, %v801
    %v807 = vlaneseq
    %v808 = vshrl.u32 %v807, 7
    %v809 = vsub.s32 %v665, %v808
    %v810 = vrot.slane %v580, %v809
    %v811 = vsel %vm670, %v810, %v806
    %v812 = vlaneseq
    %v813 = vshrl.u32 %v812, 7
    %v814 = vsub.s32 %v672, %v813
    %v815 = vrot.slane %v583, %v814
    %v816 = vsel %vm677, %v815, %v811
    %v817 = vlaneseq
    %v818 = vshrl.u32 %v817, 7
    %v819 = vsub.s32 %v679, %v818
    %v820 = vrot.slane %v586, %v819
    %v821 = vsel %vm684, %v820, %v816
    %v822 = vlaneseq
    %v823 = vshrl.u32 %v822, 7
    %v824 = vsub.s32 %v686, %v823
    %v825 = vrot.slane %v589, %v824
    %v826 = vsel %vm691, %v825, %v821
    %v827 = vlaneseq
    %v828 = vshrl.u32 %v827, 7
    %v829 = vsub.s32 %v693, %v828
    %v830 = vrot.slane %v592, %v829
    %v831 = vsel %vm698, %v830, %v826
    %v832 = vlaneseq
    %v833 = vshrl.u32 %v832, 7
    %v834 = vsub.s32 %v700, %v833
    %v835 = vrot.slane %v595, %v834
    %v836 = vsel %vm705, %v835, %v831
    %v837 = vlaneseq
    %v838 = vshrl.u32 %v837, 7
    %v839 = vsub.s32 %v707, %v838
    %v840 = vrot.slane %v598, %v839
    %v841 = vsel %vm712, %v840, %v836
    %v842 = vlaneseq
    %v843 = vshrl.u32 %v842, 7
    %v844 = vsub.s32 %v714, %v843
    %v845 = vrot.slane %v601, %v844
    %v846 = vsel %vm719, %v845, %v841
    %v847 = vlaneseq
    %v848 = vshrl.u32 %v847, 7
    %v849 = vsub.s32 %v721, %v848
    %v850 = vrot.slane %v604, %v849
    %v851 = vsel %vm726, %v850, %v846
    %v852 = vlaneseq
    %v853 = vshrl.u32 %v852, 7
    %v854 = vsub.s32 %v728, %v853
    %v855 = vrot.slane %v607, %v854
    %v856 = vsel %vm733, %v855, %v851
    %v857 = vlaneseq
    %v858 = vshrl.u32 %v857, 7
    %v859 = vsub.s32 %v735, %v858
    %v860 = vrot.slane %v610, %v859
    %v861 = vsel %vm740, %v860, %v856
    %v862 = vlaneseq
    %v863 = vshrl.u32 %v862, 7
    %v864 = vsub.s32 %v742, %v863
    %v865 = vrot.slane %v613, %v864
    %v866 = vsel %vm747, %v865, %v861
    %v867 = vlaneseq
    %v868 = vshrl.u32 %v867, 7
    %v869 = vsub.s32 %v639, %v868
    %v870 = vrot.slane %v616, %v869
    %v871 = vlaneseq
    %v872 = vshrl.u32 %v871, 7
    %v873 = vsub.s32 %v644, %v872
    %v874 = vrot.slane %v619, %v873
    %v875 = vsel %vm649, %v874, %v870
    %v876 = vlaneseq
    %v877 = vshrl.u32 %v876, 7
    %v878 = vsub.s32 %v651, %v877
    %v879 = vrot.slane %v622, %v878
    %v880 = vsel %vm656, %v879, %v875
    %v881 = vlaneseq
    %v882 = vshrl.u32 %v881, 7
    %v883 = vsub.s32 %v658, %v882
    %v884 = vrot.slane %v625, %v883
    %v885 = vsel %vm663, %v884, %v880
    %v886 = vlaneseq
    %v887 = vshrl.u32 %v886, 7
    %v888 = vsub.s32 %v665, %v887
    %v889 = vrot.slane %v628, %v888
    %v890 = vsel %vm670, %v889, %v885
    %v891 = vlaneseq
    %v892 = vshrl.u32 %v891, 7
    %v893 = vsub.s32 %v672, %v892
    %v894 = vrot.slane %v631, %v893
    %v895 = vsel %vm677, %v894, %v890
    %v896 = vlaneseq
    %v897 = vshrl.u32 %v896, 7
    %v898 = vsub.s32 %v679, %v897
    %v899 = vrot.slane %v634, %v898
    %v900 = vsel %vm684, %v899, %v895
    %v901 = vlaneseq
    %v902 = vshrl.u32 %v901, 7
    %v903 = vsub.s32 %v686, %v902
    %v904 = vrot.slane %v637, %v903
    %v905 = vsel %vm691, %v904, %v900
    %vm906 = vcmask 1041409
    %v907 = vsel %vm906, %v866, %v748
    %v908 = vsel %vm906, %v905, %v787
    %vm911 = vcmask 1041408
    %v912 = vsel %vm911, %v907, 0.0
    %vm913 = vcmask 517120
    %v914 = vsel %vm913, %v908, 0.0
    %v915 = vadd.f32 %v912, %v914
    %916 = vadd.xlane.f32.xlu0 %v915
    %v917 = vpop.xlane.xlu0 %916
    %v918 = vmul.f32 %v917, 0.00390625
    %s919 = sld [smem:[#allocation2]]
    %v920 = vstv %s919
    %v921 = vadd.f32 %v918, %v920
    %v922 = vxor.u32 %v921, 2147483648
    %v923 = vmul.f32 %v922, 1.442695
    %v924 = vpow.pop %v923
    %v925 = vadd.f32 %v924, 1.0
    %v926 = vrcp.pop %v925
    %v927 = vmul.f32 1.0, %v926
    %v929 = vlaneseq
    %v930 = vshrl.u32 %v929, 7
    %v931 = vsub.s32 0, %v930
    %v932 = vrot.slane %v927, %v931
    %v933 = vlaneseq
    %v934 = vshrl.u32 %v933, 7
    %v935 = vsub.s32 1, %v934
    %v936 = vrot.slane %v927, %v935
    %v939 = vmul.f32 %v30, %v932
    %v940 = vmul.f32 %v31, %v932
    %v941 = vmul.f32 %v32, %v932
    %v942 = vmul.f32 %v33, %v932
    %v943 = vmul.f32 %v34, %v932
    %v944 = vmul.f32 %v35, %v932
    %v945 = vmul.f32 %v36, %v932
    %v946 = vmul.f32 %v37, %v932
    %v947 = vmul.f32 %v38, %v932
    %v948 = vmul.f32 %v39, %v932
    %v949 = vmul.f32 %v40, %v932
    %v950 = vmul.f32 %v41, %v932
    %v951 = vmul.f32 %v42, %v932
    %v952 = vmul.f32 %v43, %v932
    %v953 = vmul.f32 %v44, %v932
    %v954 = vmul.f32 %v45, %v932
    %v955 = vmul.f32 %v46, %v932
    %v956 = vmul.f32 %v47, %v932
    %v957 = vmul.f32 %v48, %v932
    %v958 = vmul.f32 %v49, %v932
    %v959 = vmul.f32 %v50, %v932
    %v960 = vmul.f32 %v51, %v932
    %v961 = vmul.f32 %v52, %v932
    %v962 = vmul.f32 %v53, %v932
    %v963 = vmul.f32 %v54, %v932
    %v964 = vmul.f32 %v55, %v932
    %v965 = vmul.f32 %v56, %v932
    %v966 = vmul.f32 %v57, %v932
    %v967 = vmul.f32 %v58, %v932
    %v968 = vmul.f32 %v59, %v932
    %v969 = vmul.f32 %v60, %v932
    %v970 = vmul.f32 %v61, %v932
    %v971 = vmul.f32 %v62, %v932
    %v972 = vmul.f32 %v63, %v932
    %v973 = vmul.f32 %v64, %v932
    %v974 = vmul.f32 %v65, %v932
    %v975 = vmul.f32 %v66, %v932
    %v976 = vmul.f32 %v67, %v932
    %v977 = vmul.f32 %v68, %v932
    %v978 = vmul.f32 %v69, %v932
    %v979 = vmul.f32 %v70, %v932
    %v980 = vmul.f32 %v71, %v932
    %v981 = vmul.f32 %v72, %v932
    %v982 = vmul.f32 %v73, %v932
    %v983 = vmul.f32 %v74, %v932
    %v984 = vmul.f32 %v75, %v932
    %v985 = vmul.f32 %v76, %v932
    %v986 = vmul.f32 %v77, %v932
    %v987 = vmul.f32 %v78, %v936
    %v988 = vmul.f32 %v79, %v936
    %v989 = vmul.f32 %v80, %v936
    %v990 = vmul.f32 %v81, %v936
    %v991 = vmul.f32 %v82, %v936
    %v992 = vmul.f32 %v83, %v936
    %v993 = vmul.f32 %v84, %v936
    %v994 = vmul.f32 %v85, %v936
    %v995 = vmul.f32 %v86, %v936
    %v996 = vmul.f32 %v87, %v936
    %v997 = vmul.f32 %v88, %v936
    %v998 = vmul.f32 %v89, %v936
    %v999 = vmul.f32 %v90, %v936
    %v1000 = vmul.f32 %v91, %v936
    %v1001 = vmul.f32 %v92, %v936
    %v1002 = vmul.f32 %v93, %v936
    %v1003 = vmul.f32 %v94, %v936
    %v1004 = vmul.f32 %v95, %v936
    %v1005 = vmul.f32 %v96, %v936
    %v1006 = vmul.f32 %v97, %v936
    %v1007 = vmul.f32 %v98, %v936
    %v1008 = vmul.f32 %v99, %v936
    %v1009 = vmul.f32 %v100, %v936
    %v1010 = vmul.f32 %v101, %v936
    %v1011 = vmul.f32 %v102, %v936
    %v1012 = vmul.f32 %v103, %v936
    %v1013 = vmul.f32 %v104, %v936
    %v1014 = vmul.f32 %v105, %v936
    %v1015 = vmul.f32 %v106, %v936
    %v1016 = vmul.f32 %v107, %v936
    %v1017 = vmul.f32 %v108, %v936
    %v1018 = vmul.f32 %v109, %v936
    %v1019 = vmul.f32 %v110, %v936
    %v1020 = vmul.f32 %v111, %v936
    %v1021 = vmul.f32 %v112, %v936
    %v1022 = vmul.f32 %v113, %v936
    %v1023 = vmul.f32 %v114, %v936
    %v1024 = vmul.f32 %v115, %v936
    %v1025 = vmul.f32 %v116, %v936
    %v1026 = vmul.f32 %v117, %v936
    %v1027 = vmul.f32 %v118, %v936
    %v1028 = vmul.f32 %v119, %v936
    %v1029 = vmul.f32 %v120, %v936
    %v1030 = vmul.f32 %v121, %v936
    %v1031 = vmul.f32 %v122, %v936
    %v1032 = vmul.f32 %v123, %v936
    %v1033 = vmul.f32 %v124, %v936
    %v1034 = vmul.f32 %v125, %v936
    %1035 = vst [vmem:[#allocation6] sm:$0xff] %v939
    %1036 = vst [vmem:[#allocation6 + $0x8] sm:$0xff] %v940
    %1037 = vst [vmem:[#allocation6 + $0x10] sm:$0xff] %v941
    %1038 = vst [vmem:[#allocation6 + $0x18] sm:$0xff] %v942
    %1039 = vst [vmem:[#allocation6 + $0x20] sm:$0xff] %v943
    %1040 = vst [vmem:[#allocation6 + $0x28] sm:$0xff] %v944
    %1041 = vst [vmem:[#allocation6 + $0x30] sm:$0xff] %v945
    %1042 = vst [vmem:[#allocation6 + $0x38] sm:$0xff] %v946
    %1043 = vst [vmem:[#allocation6 + $0x40] sm:$0xff] %v947
    %1044 = vst [vmem:[#allocation6 + $0x48] sm:$0xff] %v948
    %1045 = vst [vmem:[#allocation6 + $0x50] sm:$0xff] %v949
    %1046 = vst [vmem:[#allocation6 + $0x58] sm:$0xff] %v950
    %1047 = vst [vmem:[#allocation6 + $0x60] sm:$0xff] %v951
    %1048 = vst [vmem:[#allocation6 + $0x68] sm:$0xff] %v952
    %1049 = vst [vmem:[#allocation6 + $0x70] sm:$0xff] %v953
    %1050 = vst [vmem:[#allocation6 + $0x78] sm:$0xff] %v954
    %1051 = vst [vmem:[#allocation6 + $0x80] sm:$0xff] %v955
    %1052 = vst [vmem:[#allocation6 + $0x88] sm:$0xff] %v956
    %1053 = vst [vmem:[#allocation6 + $0x90] sm:$0xff] %v957
    %1054 = vst [vmem:[#allocation6 + $0x98] sm:$0xff] %v958
    %1055 = vst [vmem:[#allocation6 + $0xa0] sm:$0xff] %v959
    %1056 = vst [vmem:[#allocation6 + $0xa8] sm:$0xff] %v960
    %1057 = vst [vmem:[#allocation6 + $0xb0] sm:$0xff] %v961
    %1058 = vst [vmem:[#allocation6 + $0xb8] sm:$0xff] %v962
    %1059 = vst [vmem:[#allocation6 + $0xc0] sm:$0xff] %v963
    %1060 = vst [vmem:[#allocation6 + $0xc8] sm:$0xff] %v964
    %1061 = vst [vmem:[#allocation6 + $0xd0] sm:$0xff] %v965
    %1062 = vst [vmem:[#allocation6 + $0xd8] sm:$0xff] %v966
    %1063 = vst [vmem:[#allocation6 + $0xe0] sm:$0xff] %v967
    %1064 = vst [vmem:[#allocation6 + $0xe8] sm:$0xff] %v968
    %1065 = vst [vmem:[#allocation6 + $0xf0] sm:$0xff] %v969
    %1066 = vst [vmem:[#allocation6 + $0xf8] sm:$0xff] %v970
    %1067 = vst [vmem:[#allocation6 + $0x100] sm:$0xff] %v971
    %1068 = vst [vmem:[#allocation6 + $0x108] sm:$0xff] %v972
    %1069 = vst [vmem:[#allocation6 + $0x110] sm:$0xff] %v973
    %1070 = vst [vmem:[#allocation6 + $0x118] sm:$0xff] %v974
    %1071 = vst [vmem:[#allocation6 + $0x120] sm:$0xff] %v975
    %1072 = vst [vmem:[#allocation6 + $0x128] sm:$0xff] %v976
    %1073 = vst [vmem:[#allocation6 + $0x130] sm:$0xff] %v977
    %1074 = vst [vmem:[#allocation6 + $0x138] sm:$0xff] %v978
    %1075 = vst [vmem:[#allocation6 + $0x140] sm:$0xff] %v979
    %1076 = vst [vmem:[#allocation6 + $0x148] sm:$0xff] %v980
    %1077 = vst [vmem:[#allocation6 + $0x150] sm:$0xff] %v981
    %1078 = vst [vmem:[#allocation6 + $0x158] sm:$0xff] %v982
    %1079 = vst [vmem:[#allocation6 + $0x160] sm:$0xff] %v983
    %1080 = vst [vmem:[#allocation6 + $0x168] sm:$0xff] %v984
    %1081 = vst [vmem:[#allocation6 + $0x170] sm:$0xff] %v985
    %1082 = vst [vmem:[#allocation6 + $0x178] sm:$0xff] %v986
    %1083 = vst [vmem:[#allocation6 + $0x180] sm:$0xff] %v987
    %1084 = vst [vmem:[#allocation6 + $0x188] sm:$0xff] %v988
    %1085 = vst [vmem:[#allocation6 + $0x190] sm:$0xff] %v989
    %1086 = vst [vmem:[#allocation6 + $0x198] sm:$0xff] %v990
    %1087 = vst [vmem:[#allocation6 + $0x1a0] sm:$0xff] %v991
    %1088 = vst [vmem:[#allocation6 + $0x1a8] sm:$0xff] %v992
    %1089 = vst [vmem:[#allocation6 + $0x1b0] sm:$0xff] %v993
    %1090 = vst [vmem:[#allocation6 + $0x1b8] sm:$0xff] %v994
    %1091 = vst [vmem:[#allocation6 + $0x1c0] sm:$0xff] %v995
    %1092 = vst [vmem:[#allocation6 + $0x1c8] sm:$0xff] %v996
    %1093 = vst [vmem:[#allocation6 + $0x1d0] sm:$0xff] %v997
    %1094 = vst [vmem:[#allocation6 + $0x1d8] sm:$0xff] %v998
    %1095 = vst [vmem:[#allocation6 + $0x1e0] sm:$0xff] %v999
    %1096 = vst [vmem:[#allocation6 + $0x1e8] sm:$0xff] %v1000
    %1097 = vst [vmem:[#allocation6 + $0x1f0] sm:$0xff] %v1001
    %1098 = vst [vmem:[#allocation6 + $0x1f8] sm:$0xff] %v1002
    %1099 = vst [vmem:[#allocation6 + $0x200] sm:$0xff] %v1003
    %1100 = vst [vmem:[#allocation6 + $0x208] sm:$0xff] %v1004
    %1101 = vst [vmem:[#allocation6 + $0x210] sm:$0xff] %v1005
    %1102 = vst [vmem:[#allocation6 + $0x218] sm:$0xff] %v1006
    %1103 = vst [vmem:[#allocation6 + $0x220] sm:$0xff] %v1007
    %1104 = vst [vmem:[#allocation6 + $0x228] sm:$0xff] %v1008
    %1105 = vst [vmem:[#allocation6 + $0x230] sm:$0xff] %v1009
    %1106 = vst [vmem:[#allocation6 + $0x238] sm:$0xff] %v1010
    %1107 = vst [vmem:[#allocation6 + $0x240] sm:$0xff] %v1011
    %1108 = vst [vmem:[#allocation6 + $0x248] sm:$0xff] %v1012
    %1109 = vst [vmem:[#allocation6 + $0x250] sm:$0xff] %v1013
    %1110 = vst [vmem:[#allocation6 + $0x258] sm:$0xff] %v1014
    %1111 = vst [vmem:[#allocation6 + $0x260] sm:$0xff] %v1015
    %1112 = vst [vmem:[#allocation6 + $0x268] sm:$0xff] %v1016
    %1113 = vst [vmem:[#allocation6 + $0x270] sm:$0xff] %v1017
    %1114 = vst [vmem:[#allocation6 + $0x278] sm:$0xff] %v1018
    %1115 = vst [vmem:[#allocation6 + $0x280] sm:$0xff] %v1019
    %1116 = vst [vmem:[#allocation6 + $0x288] sm:$0xff] %v1020
    %1117 = vst [vmem:[#allocation6 + $0x290] sm:$0xff] %v1021
    %1118 = vst [vmem:[#allocation6 + $0x298] sm:$0xff] %v1022
    %1119 = vst [vmem:[#allocation6 + $0x2a0] sm:$0xff] %v1023
    %1120 = vst [vmem:[#allocation6 + $0x2a8] sm:$0xff] %v1024
    %1121 = vst [vmem:[#allocation6 + $0x2b0] sm:$0xff] %v1025
    %1122 = vst [vmem:[#allocation6 + $0x2b8] sm:$0xff] %v1026
    %1123 = vst [vmem:[#allocation6 + $0x2c0] sm:$0xff] %v1027
    %1124 = vst [vmem:[#allocation6 + $0x2c8] sm:$0xff] %v1028
    %1125 = vst [vmem:[#allocation6 + $0x2d0] sm:$0xff] %v1029
    %1126 = vst [vmem:[#allocation6 + $0x2d8] sm:$0xff] %v1030
    %1127 = vst [vmem:[#allocation6 + $0x2e0] sm:$0xff] %v1031
    %1128 = vst [vmem:[#allocation6 + $0x2e8] sm:$0xff] %v1032
    %1129 = vst [vmem:[#allocation6 + $0x2f0] sm:$0xff] %v1033
    %1130 = vst [vmem:[#allocation6 + $0x2f8] sm:$0xff] %v1034
    // Predicated region
    $region18: #{tpu_custom_call.1} parent=1 // pred_check
      _
    $region19: #{tpu_custom_call.1} parent=1 // pred_check_branch
      %1132 = sbr.rel (0) target = $region21
    $region20: #{tpu_custom_call.1} parent=1 // pred_region
      %s1134 = ssub.s32 12288, 12288
      %1135 = vsyncadd [#allocation5], %s1134
      %s1136 = sshll.u32 [#allocation6], 4
      %s1137 = int_to_ptr.vmem [resolvable:$true] %s1136
      %1142 = dma.vmem_to_hbm [thread:$0]  %s1137, 12288, %s3, [#allocation5], 256, 256, 16
    $region21: #{tpu_custom_call.1} parent=1 // pred_fallthru
      _
    // Predicated region
    $region22: #{tpu_custom_call.1} parent=1 // pred_check
      _
    $region23: #{tpu_custom_call.1} parent=1 // pred_check_branch
      %1144 = sbr.rel (0) target = $region25
    $region24: #{tpu_custom_call.1} parent=1 // pred_region
      %1145 = dma.done [#allocation5], 12288
    $region25: #{tpu_custom_call.1} parent=1 // pred_fallthru
      _
    %1146 = vsyncpa [#allocation4], 1
    %1147 = vsyncpa [#allocation5], 1

</llo_original>
